<compile_context>
chip_gen: v6e
topology: v6e:2x2x1
jax: 0.10.0
libtpu: 0.0.40
codegen_flags: <defaults>
</compile_context>

<pallas_src>
import functools

import jax
import jax.numpy as jnp
from jax.experimental import pallas as pl
from jax.experimental.pallas import tpu as pltpu


def _round_up(x, m):
    return (x + m - 1) // m * m


# ---------------------------------------------------------------------------
# Kernel: one-hot(dow) ++ one-hot(tod)  ->  W1 (+b1) -> ReLU -> W2 (+b2)
# BN already folded into (W1, b1) / (W2, b2).
# ---------------------------------------------------------------------------
def ste_kernel(dow_ref, tod_ref, w1_ref, b1_ref, w2_ref, b2_ref, out_ref):
    tm = dow_ref.shape[0]          # rows in this tile
    c_pad = w1_ref.shape[0]        # padded one-hot width (7 + T -> mult of 128)

    dow = dow_ref[...]             # (TM, 1) int32, already % 7
    tod = tod_ref[...]             # (TM, 1) int32, already % 288
    col = jax.lax.broadcasted_iota(jnp.int32, (tm, c_pad), 1)

    # one-hot(dayofweek, 7) concatenated with one-hot(timeofday, T)
    onehot = (((col < 7) & (col == dow)) |
              ((col >= 7) & ((col - 7) == tod))).astype(jnp.float32)

    h1 = jnp.dot(onehot, w1_ref[...], preferred_element_type=jnp.float32) + b1_ref[...]
    h1 = jnp.maximum(h1, 0.0)      # layer-1 activation (ReLU); layer-2 has none
    out = jnp.dot(h1, w2_ref[...], preferred_element_type=jnp.float32) + b2_ref[...]
    out_ref[...] = out.astype(out_ref.dtype)


# ---------------------------------------------------------------------------
# Parameter folding: conv(1x1) + eval-mode BatchNorm2d  ->  (W_eff, b_eff),
# then pad to lane-dense shapes for the kernel.
# ---------------------------------------------------------------------------
def fold_and_pad_params(raw_params, *, D, T, eps=1e-5):
    (w1, b1, g1, be1, m1, v1, w2, b2, g2, be2, m2, v2) = raw_params
    C = 7 + T

    s1 = g1 / jnp.sqrt(v1 + eps)                     # (D,)
    w1_eff = (w1 * s1[:, None]).T                    # (C, D)
    b1_eff = (b1 - m1) * s1 + be1                    # (D,)

    s2 = g2 / jnp.sqrt(v2 + eps)
    w2_eff = (w2 * s2[:, None]).T                    # (D, D)
    b2_eff = (b2 - m2) * s2 + be2

    C_pad = _round_up(C, 128)
    D_pad = _round_up(D, 128)
    w1_p = jnp.zeros((C_pad, D_pad), jnp.float32).at[:C, :D].set(w1_eff)
    b1_p = jnp.zeros((1, D_pad), jnp.float32).at[0, :D].set(b1_eff)
    w2_p = jnp.zeros((D_pad, D_pad), jnp.float32).at[:D, :D].set(w2_eff)
    b2_p = jnp.zeros((1, D_pad), jnp.float32).at[0, :D].set(b2_eff)
    return w1_p, b1_p, w2_p, b2_p


# ---------------------------------------------------------------------------
# Forward wrapper.  TE: (B, P, 2) float (dayofweek, timeofday) -> (B, P, 1, D)
# ---------------------------------------------------------------------------
@functools.partial(jax.jit, static_argnames=("T", "D"))
def ste_forward(TE, folded_params, *, T, D):
    del T  # the PyTorch reference hard-codes % 288 for timeofday
    w1_p, b1_p, w2_p, b2_p = folded_params
    C_pad, D_pad = w1_p.shape

    B, P, _ = TE.shape
    M = B * P
    if M <= 512:
        M_pad = _round_up(M, 8)
        TM = M_pad
    else:
        TM = 256
        M_pad = _round_up(M, TM)

    te_i = TE.astype(jnp.int32).reshape(M, 2)
    dow = (te_i[:, 0] % 7).reshape(M, 1)
    tod = (te_i[:, 1] % 288).reshape(M, 1)
    dow = jnp.zeros((M_pad, 1), jnp.int32).at[:M].set(dow)
    tod = jnp.zeros((M_pad, 1), jnp.int32).at[:M].set(tod)

    out = pl.pallas_call(
        ste_kernel,
        out_shape=jax.ShapeDtypeStruct((M_pad, D_pad), jnp.float32),
        grid_spec=pltpu.PrefetchScalarGridSpec(
            num_scalar_prefetch=0,
            grid=(M_pad // TM,),
            in_specs=[
                pl.BlockSpec((TM, 1), lambda i: (i, 0)),          # dayofweek idx
                pl.BlockSpec((TM, 1), lambda i: (i, 0)),          # timeofday idx
                pl.BlockSpec((C_pad, D_pad), lambda i: (0, 0)),   # W1 (BN folded)
                pl.BlockSpec((1, D_pad), lambda i: (0, 0)),       # b1
                pl.BlockSpec((D_pad, D_pad), lambda i: (0, 0)),   # W2 (BN folded)
                pl.BlockSpec((1, D_pad), lambda i: (0, 0)),       # b2
            ],
            out_specs=pl.BlockSpec((TM, D_pad), lambda i: (i, 0)),
        ),
        compiler_params=pltpu.CompilerParams(
            dimension_semantics=("parallel",)),
    )(dow, tod, w1_p, b1_p, w2_p, b2_p)

    return out[:M, :D].reshape(B, P, 1, D)


# ---------------------------------------------------------------------------
# Pure-JAX reference mirroring the PyTorch module (eval-mode BatchNorm).
# ---------------------------------------------------------------------------
def reference_forward(TE, raw_params, *, T, D, eps=1e-5):
    (w1, b1, g1, be1, m1, v1, w2, b2, g2, be2, m2, v2) = raw_params
    dow = jax.nn.one_hot(TE[..., 0].astype(jnp.int32) % 7, 7, dtype=jnp.float32)
    tod = jax.nn.one_hot(TE[..., 1].astype(jnp.int32) % 288, T, dtype=jnp.float32)
    x = jnp.concatenate([dow, tod], axis=-1)[:, :, None, :]      # (B, P, 1, 7+T)
    # Conv2D block 1: 1x1 conv -> BN -> ReLU
    y = x @ w1.T + b1
    y = (y - m1) / jnp.sqrt(v1 + eps) * g1 + be1
    y = jnp.maximum(y, 0.0)
    # Conv2D block 2: 1x1 conv -> BN (no activation)
    y = y @ w2.T + b2
    y = (y - m2) / jnp.sqrt(v2 + eps) * g2 + be2
    return y


if __name__ == "__main__":
    # Small shapes consistent with SpatioTemporalEmbedding:
    #   batch=2, num_his+num_pred=8, D=64, steps_per_day T=288 (code hard-codes %288)
    B, P, D, T = 2, 8, 64, 288
    C = 7 + T

    key = jax.random.PRNGKey(0)
    keys = jax.random.split(key, 16)
    dow_idx = jax.random.randint(keys[0], (B, P), 0, 7)
    tod_idx = jax.random.randint(keys[1], (B, P), 0, T)
    TE = jnp.stack([dow_idx, tod_idx], axis=-1).astype(jnp.float32)   # (B, P, 2)

    # Conv2D(1x1) weights + eval-mode BatchNorm2d statistics for both layers.
    w1 = jax.random.uniform(keys[2], (D, C), jnp.float32, -0.1, 0.1)
    b1 = jax.random.uniform(keys[3], (D,), jnp.float32, -0.1, 0.1)
    g1 = jax.random.uniform(keys[4], (D,), jnp.float32, 0.5, 1.5)
    be1 = jax.random.uniform(keys[5], (D,), jnp.float32, -0.5, 0.5)
    m1 = 0.1 * jax.random.normal(keys[6], (D,), jnp.float32)
    v1 = jax.random.uniform(keys[7], (D,), jnp.float32, 0.5, 1.5)
    w2 = jax.random.uniform(keys[8], (D, D), jnp.float32, -0.1, 0.1)
    b2 = jax.random.uniform(keys[9], (D,), jnp.float32, -0.1, 0.1)
    g2 = jax.random.uniform(keys[10], (D,), jnp.float32, 0.5, 1.5)
    be2 = jax.random.uniform(keys[11], (D,), jnp.float32, -0.5, 0.5)
    m2 = 0.1 * jax.random.normal(keys[12], (D,), jnp.float32)
    v2 = jax.random.uniform(keys[13], (D,), jnp.float32, 0.5, 1.5)
    raw = (w1, b1, g1, be1, m1, v1, w2, b2, g2, be2, m2, v2)

    folded = fold_and_pad_params(raw, D=D, T=T)

    out = ste_forward(TE, folded, T=T, D=D)
    out = jax.block_until_ready(out)

    ref = reference_forward(TE, raw, T=T, D=D)
    assert out.shape == (B, P, 1, D), out.shape
    assert jnp.allclose(out, ref, atol=5e-3, rtol=5e-3), float(jnp.max(jnp.abs(out - ref)))

    print("KERNEL_OK")
</pallas_src>

<mosaic_0001>
module attributes {stable_mosaic.version = 11 : i64} {
  func.func @ste_kernel(%arg0: i32, %arg1: memref<16x1xi32, #tpu.memory_space<vmem>>, %arg2: memref<16x1xi32, #tpu.memory_space<vmem>>, %arg3: memref<384x128xf32, #tpu.memory_space<vmem>>, %arg4: memref<1x128xf32, #tpu.memory_space<vmem>>, %arg5: memref<128x128xf32, #tpu.memory_space<vmem>>, %arg6: memref<1x128xf32, #tpu.memory_space<vmem>>, %arg7: memref<16x128xf32, #tpu.memory_space<vmem>>) attributes {dimension_semantics = [#tpu.dimension_semantics<parallel>], iteration_bounds = array<i64: 1>, scalar_prefetch = 0 : i64, scratch_operands = 0 : i64, tpu.core_type = #tpu.core_type<tc>, window_params = [{transform_indices = @transform_0, window_bounds = array<i64: 16, 1>}, {transform_indices = @transform_1, window_bounds = array<i64: 16, 1>}, {pipeline_mode = #tpu.pipeline_mode<synchronous>, transform_indices = @transform_2, window_bounds = array<i64: 384, 128>}, {pipeline_mode = #tpu.pipeline_mode<synchronous>, transform_indices = @transform_3, window_bounds = array<i64: 1, 128>}, {pipeline_mode = #tpu.pipeline_mode<synchronous>, transform_indices = @transform_4, window_bounds = array<i64: 128, 128>}, {pipeline_mode = #tpu.pipeline_mode<synchronous>, transform_indices = @transform_5, window_bounds = array<i64: 1, 128>}, {transform_indices = @transform_6, window_bounds = array<i64: 16, 128>}]} {
    %c0 = arith.constant 0 : index
    %c0_0 = arith.constant 0 : index
    %0 = vector.load %arg1[%c0, %c0_0] : memref<16x1xi32, #tpu.memory_space<vmem>>, vector<16x1xi32>
    %c0_1 = arith.constant 0 : index
    %c0_2 = arith.constant 0 : index
    %1 = vector.load %arg2[%c0_1, %c0_2] : memref<16x1xi32, #tpu.memory_space<vmem>>, vector<16x1xi32>
    %2 = tpu.iota {dimensions = array<i32: 1>} : vector<16x384xi32>
    %c7_i32 = arith.constant 7 : i32
    %3 = vector.broadcast %c7_i32 : i32 to vector<16x384xi32>
    %4 = arith.cmpi slt, %2, %3 : vector<16x384xi32>
    %5 = vector.broadcast %0 : vector<16x1xi32> to vector<16x384xi32>
    %6 = arith.cmpi eq, %2, %5 : vector<16x384xi32>
    %7 = arith.andi %4, %6 : vector<16x384xi1>
    %c7_i32_3 = arith.constant 7 : i32
    %8 = vector.broadcast %c7_i32_3 : i32 to vector<16x384xi32>
    %9 = arith.cmpi sge, %2, %8 : vector<16x384xi32>
    %c7_i32_4 = arith.constant 7 : i32
    %10 = vector.broadcast %c7_i32_4 : i32 to vector<16x384xi32>
    %11 = arith.subi %2, %10 : vector<16x384xi32>
    %12 = vector.broadcast %1 : vector<16x1xi32> to vector<16x384xi32>
    %13 = arith.cmpi eq, %11, %12 : vector<16x384xi32>
    %14 = arith.andi %9, %13 : vector<16x384xi1>
    %15 = arith.ori %7, %14 : vector<16x384xi1>
    %16 = arith.extui %15 : vector<16x384xi1> to vector<16x384xi32>
    %17 = arith.sitofp %16 : vector<16x384xi32> to vector<16x384xf32>
    %c0_5 = arith.constant 0 : index
    %c0_6 = arith.constant 0 : index
    %18 = vector.load %arg3[%c0_5, %c0_6] : memref<384x128xf32, #tpu.memory_space<vmem>>, vector<384x128xf32>
    %cst = arith.constant dense<0.000000e+00> : vector<16x128xf32>
    %19 = tpu.matmul %17, %18, %cst {dimension_numbers = #tpu.dot_dimension_numbers<[1], [0], [0], [1], [0, 0, 1, 1], [], []>} : vector<16x384xf32>, vector<384x128xf32>, vector<16x128xf32> -> vector<16x128xf32>
    %c0_7 = arith.constant 0 : index
    %c0_8 = arith.constant 0 : index
    %20 = vector.load %arg4[%c0_7, %c0_8] : memref<1x128xf32, #tpu.memory_space<vmem>>, vector<1x128xf32>
    %21 = vector.broadcast %20 : vector<1x128xf32> to vector<16x128xf32>
    %22 = arith.addf %19, %21 : vector<16x128xf32>
    %cst_9 = arith.constant 0.000000e+00 : f32
    %23 = vector.broadcast %cst_9 : f32 to vector<16x128xf32>
    %24 = arith.maximumf %22, %23 : vector<16x128xf32>
    %c0_10 = arith.constant 0 : index
    %c0_11 = arith.constant 0 : index
    %25 = vector.load %arg5[%c0_10, %c0_11] : memref<128x128xf32, #tpu.memory_space<vmem>>, vector<128x128xf32>
    %cst_12 = arith.constant dense<0.000000e+00> : vector<16x128xf32>
    %26 = tpu.matmul %24, %25, %cst_12 {dimension_numbers = #tpu.dot_dimension_numbers<[1], [0], [0], [1], [0, 0, 1, 1], [], []>} : vector<16x128xf32>, vector<128x128xf32>, vector<16x128xf32> -> vector<16x128xf32>
    %c0_13 = arith.constant 0 : index
    %c0_14 = arith.constant 0 : index
    %27 = vector.load %arg6[%c0_13, %c0_14] : memref<1x128xf32, #tpu.memory_space<vmem>>, vector<1x128xf32>
    %28 = vector.broadcast %27 : vector<1x128xf32> to vector<16x128xf32>
    %29 = arith.addf %26, %28 : vector<16x128xf32>
    %c0_15 = arith.constant 0 : index
    %c0_16 = arith.constant 0 : index
    %30 = vector.load %arg7[%c0_15, %c0_16] : memref<16x128xf32, #tpu.memory_space<vmem>>, vector<16x128xf32>
    tpu.vector_store %arg7[%c0_15, %c0_16], %29 {strides = array<i32>} : memref<16x128xf32, #tpu.memory_space<vmem>>, vector<16x128xf32>,
    return
  }
  func.func @transform_0(%arg0: i32) -> (i32, i32) {
    %c0_i32 = arith.constant 0 : i32
    %c0_i32_0 = arith.constant 0 : i32
    return %arg0, %c0_i32 : i32, i32
  }
  func.func @transform_1(%arg0: i32) -> (i32, i32) {
    %c0_i32 = arith.constant 0 : i32
    %c0_i32_0 = arith.constant 0 : i32
    return %arg0, %c0_i32 : i32, i32
  }
  func.func @transform_2(%arg0: i32) -> (i32, i32) {
    %c0_i32 = arith.constant 0 : i32
    %c0_i32_0 = arith.constant 0 : i32
    %c0_i32_1 = arith.constant 0 : i32
    return %c0_i32, %c0_i32_0 : i32, i32
  }
  func.func @transform_3(%arg0: i32) -> (i32, i32) {
    %c0_i32 = arith.constant 0 : i32
    %c0_i32_0 = arith.constant 0 : i32
    %c0_i32_1 = arith.constant 0 : i32
    return %c0_i32, %c0_i32_0 : i32, i32
  }
  func.func @transform_4(%arg0: i32) -> (i32, i32) {
    %c0_i32 = arith.constant 0 : i32
    %c0_i32_0 = arith.constant 0 : i32
    %c0_i32_1 = arith.constant 0 : i32
    return %c0_i32, %c0_i32_0 : i32, i32
  }
  func.func @transform_5(%arg0: i32) -> (i32, i32) {
    %c0_i32 = arith.constant 0 : i32
    %c0_i32_0 = arith.constant 0 : i32
    %c0_i32_1 = arith.constant 0 : i32
    return %c0_i32, %c0_i32_0 : i32, i32
  }
  func.func @transform_6(%arg0: i32) -> (i32, i32) {
    %c0_i32 = arith.constant 0 : i32
    %c0_i32_0 = arith.constant 0 : i32
    return %arg0, %c0_i32 : i32, i32
  }
}

</mosaic_0001>

<llo_original>
// kernel: ste_forward.1
$region0: #{ste_forward.1}
  #allocation0 [shape = 'u32[]', space=smem, size = 0x4, offset = 0x4, fixed_abs, tag = 'smem constant byte address 0x4 - core index']
  #allocation1 [shape = 'u32[144,128]{1,0:T(1,128)}', space=vmem, size = 0x12000, scoped, tag = 'internal scratch']
  %s0 = inlined_call_operand.vmem [shape: s32[16,1], index: 0, kind: input, shape index: {}]
  %s1 = inlined_call_operand.vmem [shape: s32[16,1], index: 1, kind: input, shape index: {}]
  %s2 = inlined_call_operand.hbm [shape: f32[384,128], index: 2, kind: input, shape index: {}]
  %s3 = inlined_call_operand.vmem [shape: f32[1,128], index: 3, kind: input, shape index: {}]
  %s4 = inlined_call_operand.hbm [shape: f32[128,128], index: 4, kind: input, shape index: {}]
  %s5 = inlined_call_operand.vmem [shape: f32[1,128], index: 5, kind: input, shape index: {}]
  %s6 = inlined_call_operand.hbm [shape: f32[16,128], index: 6, kind: output, shape index: {}]
  %s7 = sld [smem:[#allocation0]]
  $region42: #{ste_forward.1} parent=0
    _
  %s9 = ssub.s32 1, %s7
  %s10 = scalar_select 0, %s9, %s7
  $region1: #{ste_forward.1} parent=0
    #allocation2 [shape = 'u8[196608]{0}', space=vmem, size = 0x30000, scoped, tag = 'input window, operand 2, single buffered']
    #allocation3 [shape = 's32[1]{0}', space=sflag, size = 0x4, scoped, tag = 'scoped memory for ste_forward.1']
    #allocation4 [shape = 's32[1]{0}', space=sflag, size = 0x4, scoped, tag = 'scoped memory for ste_forward.1']
    #allocation5 [shape = 'u8[65536]{0}', space=vmem, size = 0x10000, scoped, tag = 'input window, operand 4, single buffered']
    #allocation6 [shape = 's32[1]{0}', space=sflag, size = 0x4, scoped, tag = 'scoped memory for ste_forward.1']
    #allocation7 [shape = 'u8[8192]{0}', space=vmem, size = 0x2000, scoped, tag = 'output window, operand 0, single buffered']
    %11 = vsyncpa [#allocation3], 0
    %12 = vsyncpa [#allocation6], 0
    %13 = vsyncpa [#allocation4], 0
    // Predicated region
    $region2: #{ste_forward.1} parent=1 // pred_check
      _
    $region3: #{ste_forward.1} parent=1 // pred_check_branch
      %15 = sbr.rel (0) target = $region5
    $region4: #{ste_forward.1} parent=1 // pred_region
      _
    $region5: #{ste_forward.1} parent=1 // pred_fallthru
      _
    // Predicated region
    $region6: #{ste_forward.1} parent=1 // pred_check
      _
    $region7: #{ste_forward.1} parent=1 // pred_check_branch
      %17 = sbr.rel (0) target = $region9
    $region8: #{ste_forward.1} parent=1 // pred_region
      _
    $region9: #{ste_forward.1} parent=1 // pred_fallthru
      _
    // Predicated region
    $region10: #{ste_forward.1} parent=1 // pred_check
      _
    $region11: #{ste_forward.1} parent=1 // pred_check_branch
      %19 = sbr.rel (0) target = $region13
    $region12: #{ste_forward.1} parent=1 // pred_region
      %s21 = ssub.s32 6144, 6144
      %22 = vsyncadd [#allocation3], %s21
      %s23 = sshll.u32 [#allocation2], 4
      %s24 = int_to_ptr.vmem [resolvable:$true] %s23
      %29 = dma.hbm_to_vmem [thread:$0]  %s2, 6144, %s24, [#allocation3], 128, 128, 8
    $region13: #{ste_forward.1} parent=1 // pred_fallthru
      _
    // Predicated region
    $region14: #{ste_forward.1} parent=1 // pred_check
      _
    $region15: #{ste_forward.1} parent=1 // pred_check_branch
      %31 = sbr.rel (0) target = $region17
    $region16: #{ste_forward.1} parent=1 // pred_region
      _
    $region17: #{ste_forward.1} parent=1 // pred_fallthru
      _
    // Predicated region
    $region18: #{ste_forward.1} parent=1 // pred_check
      _
    $region19: #{ste_forward.1} parent=1 // pred_check_branch
      %33 = sbr.rel (0) target = $region21
    $region20: #{ste_forward.1} parent=1 // pred_region
      %s35 = ssub.s32 2048, 2048
      %36 = vsyncadd [#allocation6], %s35
      %s37 = sshll.u32 [#allocation5], 4
      %s38 = int_to_ptr.vmem [resolvable:$true] %s37
      %43 = dma.hbm_to_vmem [thread:$0]  %s4, 2048, %s38, [#allocation6], 128, 128, 8
    $region21: #{ste_forward.1} parent=1 // pred_fallthru
      _
    // Predicated region
    $region22: #{ste_forward.1} parent=1 // pred_check
      _
    $region23: #{ste_forward.1} parent=1 // pred_check_branch
      %45 = sbr.rel (0) target = $region25
    $region24: #{ste_forward.1} parent=1 // pred_region
      _
    $region25: #{ste_forward.1} parent=1 // pred_fallthru
      _
    // Predicated region
    $region26: #{ste_forward.1} parent=1 // pred_check
      _
    $region27: #{ste_forward.1} parent=1 // pred_check_branch
      %47 = sbr.rel (0) target = $region29
    $region28: #{ste_forward.1} parent=1 // pred_region
      %48 = dma.done [#allocation3], 6144
    $region29: #{ste_forward.1} parent=1 // pred_fallthru
      _
    // Predicated region
    $region30: #{ste_forward.1} parent=1 // pred_check
      _
    $region31: #{ste_forward.1} parent=1 // pred_check_branch
      %50 = sbr.rel (0) target = $region33
    $region32: #{ste_forward.1} parent=1 // pred_region
      %51 = dma.done [#allocation6], 2048
    $region33: #{ste_forward.1} parent=1 // pred_fallthru
      _
    %v52 = vld [vmem:[%s0] sm:$0xff]
    %v53 = vld [vmem:[%s0 + $0x8] sm:$0xff]
    %v54 = vld [vmem:[%s1] sm:$0xff]
    %v55 = vld [vmem:[%s1 + $0x8] sm:$0xff]
    %v56 = vlaneseq
    %v57 = vand.u32 %v56, 127
    %v58 = vadd.s32 %v57, 128
    %v59 = vadd.s32 %v57, 256
    %vm60 = vcmp.lt.s32.totalorder %v57, 7
    %vm61 = vcmp.lt.s32.totalorder %v58, 7
    %vm62 = vcmp.lt.s32.totalorder %v59, 7
    %63 = vset.pattern.permute.xlu0 0
    %64 = vperm.xlu0 %63, %v52
    %v65 = vpop.permute.xlu0 %64
    %66 = vset.pattern.permute.xlu0 0
    %67 = vperm.xlu0 %66, %v53
    %v68 = vpop.permute.xlu0 %67
    %vm69 = vcmp.eq.s32.totalorder %v57, %v65
    %vm70 = vcmp.eq.s32.totalorder %v58, %v65
    %vm71 = vcmp.eq.s32.totalorder %v59, %v65
    %vm72 = vcmp.eq.s32.totalorder %v57, %v68
    %vm73 = vcmp.eq.s32.totalorder %v58, %v68
    %vm74 = vcmp.eq.s32.totalorder %v59, %v68
    %vm75 = vmand %vm60, %vm69
    %vm76 = vmand %vm61, %vm70
    %vm77 = vmand %vm62, %vm71
    %vm78 = vmand %vm60, %vm72
    %vm79 = vmand %vm61, %vm73
    %vm80 = vmand %vm62, %vm74
    %vm81 = vcmp.ge.s32.totalorder %v57, 7
    %vm82 = vcmp.ge.s32.totalorder %v58, 7
    %vm83 = vcmp.ge.s32.totalorder %v59, 7
    %v84 = vsub.s32 %v57, 7
    %v85 = vsub.s32 %v58, 7
    %v86 = vsub.s32 %v59, 7
    %87 = vset.pattern.permute.xlu0 0
    %88 = vperm.xlu0 %87, %v54
    %v89 = vpop.permute.xlu0 %88
    %90 = vset.pattern.permute.xlu0 0
    %91 = vperm.xlu0 %90, %v55
    %v92 = vpop.permute.xlu0 %91
    %vm93 = vcmp.eq.s32.totalorder %v84, %v89
    %vm94 = vcmp.eq.s32.totalorder %v85, %v89
    %vm95 = vcmp.eq.s32.totalorder %v86, %v89
    %vm96 = vcmp.eq.s32.totalorder %v84, %v92
    %vm97 = vcmp.eq.s32.totalorder %v85, %v92
    %vm98 = vcmp.eq.s32.totalorder %v86, %v92
    %vm99 = vmand %vm81, %vm93
    %vm100 = vmand %vm82, %vm94
    %vm101 = vmand %vm83, %vm95
    %vm102 = vmand %vm81, %vm96
    %vm103 = vmand %vm82, %vm97
    %vm104 = vmand %vm83, %vm98
    %vm105 = vmor %vm75, %vm99
    %vm106 = vmor %vm76, %vm100
    %vm107 = vmor %vm77, %vm101
    %vm108 = vmor %vm78, %vm102
    %vm109 = vmor %vm79, %vm103
    %vm110 = vmor %vm80, %vm104
    %v111 = vsel %vm105, 1, 0
    %v112 = vsel %vm106, 1, 0
    %v113 = vsel %vm107, 1, 0
    %v114 = vsel %vm108, 1, 0
    %v115 = vsel %vm109, 1, 0
    %v116 = vsel %vm110, 1, 0
    %v117 = vcvt.s32.f32 %v111
    %v118 = vcvt.s32.f32 %v112
    %v119 = vcvt.s32.f32 %v113
    %v120 = vcvt.s32.f32 %v114
    %v121 = vcvt.s32.f32 %v115
    %v122 = vcvt.s32.f32 %v116
    %v123 = vld [vmem:[#allocation2] sm:$0xff]
    %v124 = vld [vmem:[#allocation2 + $0x8] sm:$0xff]
    %v125 = vld [vmem:[#allocation2 + $0x10] sm:$0xff]
    %v126 = vld [vmem:[#allocation2 + $0x18] sm:$0xff]
    %v127 = vld [vmem:[#allocation2 + $0x20] sm:$0xff]
    %v128 = vld [vmem:[#allocation2 + $0x28] sm:$0xff]
    %v129 = vld [vmem:[#allocation2 + $0x30] sm:$0xff]
    %v130 = vld [vmem:[#allocation2 + $0x38] sm:$0xff]
    %v131 = vld [vmem:[#allocation2 + $0x40] sm:$0xff]
    %v132 = vld [vmem:[#allocation2 + $0x48] sm:$0xff]
    %v133 = vld [vmem:[#allocation2 + $0x50] sm:$0xff]
    %v134 = vld [vmem:[#allocation2 + $0x58] sm:$0xff]
    %v135 = vld [vmem:[#allocation2 + $0x60] sm:$0xff]
    %v136 = vld [vmem:[#allocation2 + $0x68] sm:$0xff]
    %v137 = vld [vmem:[#allocation2 + $0x70] sm:$0xff]
    %v138 = vld [vmem:[#allocation2 + $0x78] sm:$0xff]
    %v139 = vld [vmem:[#allocation2 + $0x80] sm:$0xff]
    %v140 = vld [vmem:[#allocation2 + $0x88] sm:$0xff]
    %v141 = vld [vmem:[#allocation2 + $0x90] sm:$0xff]
    %v142 = vld [vmem:[#allocation2 + $0x98] sm:$0xff]
    %v143 = vld [vmem:[#allocation2 + $0xa0] sm:$0xff]
    %v144 = vld [vmem:[#allocation2 + $0xa8] sm:$0xff]
    %v145 = vld [vmem:[#allocation2 + $0xb0] sm:$0xff]
    %v146 = vld [vmem:[#allocation2 + $0xb8] sm:$0xff]
    %v147 = vld [vmem:[#allocation2 + $0xc0] sm:$0xff]
    %v148 = vld [vmem:[#allocation2 + $0xc8] sm:$0xff]
    %v149 = vld [vmem:[#allocation2 + $0xd0] sm:$0xff]
    %v150 = vld [vmem:[#allocation2 + $0xd8] sm:$0xff]
    %v151 = vld [vmem:[#allocation2 + $0xe0] sm:$0xff]
    %v152 = vld [vmem:[#allocation2 + $0xe8] sm:$0xff]
    %v153 = vld [vmem:[#allocation2 + $0xf0] sm:$0xff]
    %v154 = vld [vmem:[#allocation2 + $0xf8] sm:$0xff]
    %v155 = vld [vmem:[#allocation2 + $0x100] sm:$0xff]
    %v156 = vld [vmem:[#allocation2 + $0x108] sm:$0xff]
    %v157 = vld [vmem:[#allocation2 + $0x110] sm:$0xff]
    %v158 = vld [vmem:[#allocation2 + $0x118] sm:$0xff]
    %v159 = vld [vmem:[#allocation2 + $0x120] sm:$0xff]
    %v160 = vld [vmem:[#allocation2 + $0x128] sm:$0xff]
    %v161 = vld [vmem:[#allocation2 + $0x130] sm:$0xff]
    %v162 = vld [vmem:[#allocation2 + $0x138] sm:$0xff]
    %v163 = vld [vmem:[#allocation2 + $0x140] sm:$0xff]
    %v164 = vld [vmem:[#allocation2 + $0x148] sm:$0xff]
    %v165 = vld [vmem:[#allocation2 + $0x150] sm:$0xff]
    %v166 = vld [vmem:[#allocation2 + $0x158] sm:$0xff]
    %v167 = vld [vmem:[#allocation2 + $0x160] sm:$0xff]
    %v168 = vld [vmem:[#allocation2 + $0x168] sm:$0xff]
    %v169 = vld [vmem:[#allocation2 + $0x170] sm:$0xff]
    %v170 = vld [vmem:[#allocation2 + $0x178] sm:$0xff]
    %v171 = vld [vmem:[%s3] sm:$0x1]
    %v173 = vlaneseq
    %v174 = vshrl.u32 %v173, 7
    %v175 = vsub.s32 0, %v174
    %v176 = vrot.slane %v171, %v175
    %178 = vmatprep.subr.mxu0 0.0
    %179 = vmatpush1.msra.mxu0 %v138
    %180 = vmatprep.subr.mxu0 0.0
    %181 = vmatpush1.msra.mxu0 %v137
    %182 = vmatprep.subr.mxu0 0.0
    %183 = vmatpush1.msra.mxu0 %v136
    %184 = vmatprep.subr.mxu0 0.0
    %185 = vmatpush1.msra.mxu0 %v135
    %186 = vmatprep.subr.mxu0 0.0
    %187 = vmatpush1.msra.mxu0 %v134
    %188 = vmatprep.subr.mxu0 0.0
    %189 = vmatpush1.msra.mxu0 %v133
    %190 = vmatprep.subr.mxu0 0.0
    %191 = vmatpush1.msra.mxu0 %v132
    %192 = vmatprep.subr.mxu0 0.0
    %193 = vmatpush1.msra.mxu0 %v131
    %194 = vmatprep.subr.mxu0 0.0
    %195 = vmatpush1.msra.mxu0 %v130
    %196 = vmatprep.subr.mxu0 0.0
    %197 = vmatpush1.msra.mxu0 %v129
    %198 = vmatprep.subr.mxu0 0.0
    %199 = vmatpush1.msra.mxu0 %v128
    %200 = vmatprep.subr.mxu0 0.0
    %201 = vmatpush1.msra.mxu0 %v127
    %202 = vmatprep.subr.mxu0 0.0
    %203 = vmatpush1.msra.mxu0 %v126
    %204 = vmatprep.subr.mxu0 0.0
    %205 = vmatpush1.msra.mxu0 %v125
    %206 = vmatprep.subr.mxu0 0.0
    %207 = vmatpush1.msra.mxu0 %v124
    %208 = vmatprep.subr.mxu0 0.0
    %209 = vmatpush1.msra.mxu0 %v123
    %210 = vmatprep.subr.mxu0 0.0
    %211 = vmatpush2.msra.mxu0 %v154
    %212 = vmatprep.subr.mxu0 0.0
    %213 = vmatpush2.msra.mxu0 %v153
    %214 = vmatprep.subr.mxu0 0.0
    %215 = vmatpush2.msra.mxu0 %v152
    %216 = vmatprep.subr.mxu0 0.0
    %217 = vmatpush2.msra.mxu0 %v151
    %218 = vmatprep.subr.mxu0 0.0
    %219 = vmatpush2.msra.mxu0 %v150
    %220 = vmatprep.subr.mxu0 0.0
    %221 = vmatpush2.msra.mxu0 %v149
    %222 = vmatprep.subr.mxu0 0.0
    %223 = vmatpush2.msra.mxu0 %v148
    %224 = vmatprep.subr.mxu0 0.0
    %225 = vmatpush2.msra.mxu0 %v147
    %226 = vmatprep.subr.mxu0 0.0
    %227 = vmatpush2.msra.mxu0 %v146
    %228 = vmatprep.subr.mxu0 0.0
    %229 = vmatpush2.msra.mxu0 %v145
    %230 = vmatprep.subr.mxu0 0.0
    %231 = vmatpush2.msra.mxu0 %v144
    %232 = vmatprep.subr.mxu0 0.0
    %233 = vmatpush2.msra.mxu0 %v143
    %234 = vmatprep.subr.mxu0 0.0
    %235 = vmatpush2.msra.mxu0 %v142
    %236 = vmatprep.subr.mxu0 0.0
    %237 = vmatpush2.msra.mxu0 %v141
    %238 = vmatprep.subr.mxu0 0.0
    %239 = vmatpush2.msra.mxu0 %v140
    %240 = vmatprep.subr.mxu0 0.0
    %241 = vmatpush2.msra.mxu0 %v139
    %242 = vmatprep.mubr.f32.mxu0 %v118
    %243 = vmatmul.mubr.f32.gmra.mxu0 %v117
    %v244 = vpop.f32.mrf.mxu0
    %v245 = vadd.f32 %v176, %v244
    %v246 = vpop.f32.mrf.mxu0
    %247 = vmatprep.mubr.f32.mxu0 %v121
    %248 = vmatmul.mubr.f32.gmra.mxu0 %v120
    %v249 = vpop.f32.mrf.mxu0
    %v250 = vadd.f32 %v176, %v249
    %v251 = vpop.f32.mrf.mxu0
    %252 = vdwg.mxu0
    %253 = vmatprep.subr.mxu0 0.0
    %254 = vmatpush1.msra.mxu0 %v170
    %255 = vmatprep.subr.mxu0 0.0
    %256 = vmatpush1.msra.mxu0 %v169
    %257 = vmatprep.subr.mxu0 0.0
    %258 = vmatpush1.msra.mxu0 %v168
    %259 = vmatprep.subr.mxu0 0.0
    %260 = vmatpush1.msra.mxu0 %v167
    %261 = vmatprep.subr.mxu0 0.0
    %262 = vmatpush1.msra.mxu0 %v166
    %263 = vmatprep.subr.mxu0 0.0
    %264 = vmatpush1.msra.mxu0 %v165
    %265 = vmatprep.subr.mxu0 0.0
    %266 = vmatpush1.msra.mxu0 %v164
    %267 = vmatprep.subr.mxu0 0.0
    %268 = vmatpush1.msra.mxu0 %v163
    %269 = vmatprep.subr.mxu0 0.0
    %270 = vmatpush1.msra.mxu0 %v162
    %271 = vmatprep.subr.mxu0 0.0
    %272 = vmatpush1.msra.mxu0 %v161
    %273 = vmatprep.subr.mxu0 0.0
    %274 = vmatpush1.msra.mxu0 %v160
    %275 = vmatprep.subr.mxu0 0.0
    %276 = vmatpush1.msra.mxu0 %v159
    %277 = vmatprep.subr.mxu0 0.0
    %278 = vmatpush1.msra.mxu0 %v158
    %279 = vmatprep.subr.mxu0 0.0
    %280 = vmatpush1.msra.mxu0 %v157
    %281 = vmatprep.subr.mxu0 0.0
    %282 = vmatpush1.msra.mxu0 %v156
    %283 = vmatprep.subr.mxu0 0.0
    %284 = vmatpush1.msra.mxu0 %v155
    %285 = vmatprep.subr.mxu0 0.0
    %286 = vmatpush2.msra.mxu0 0.0
    %287 = vmatprep.subr.mxu0 0.0
    %288 = vmatpush2.msra.mxu0 0.0
    %289 = vmatprep.subr.mxu0 0.0
    %290 = vmatpush2.msra.mxu0 0.0
    %291 = vmatprep.subr.mxu0 0.0
    %292 = vmatpush2.msra.mxu0 0.0
    %293 = vmatprep.subr.mxu0 0.0
    %294 = vmatpush2.msra.mxu0 0.0
    %295 = vmatprep.subr.mxu0 0.0
    %296 = vmatpush2.msra.mxu0 0.0
    %297 = vmatprep.subr.mxu0 0.0
    %298 = vmatpush2.msra.mxu0 0.0
    %299 = vmatprep.subr.mxu0 0.0
    %300 = vmatpush2.msra.mxu0 0.0
    %301 = vmatprep.subr.mxu0 0.0
    %302 = vmatpush2.msra.mxu0 0.0
    %303 = vmatprep.subr.mxu0 0.0
    %304 = vmatpush2.msra.mxu0 0.0
    %305 = vmatprep.subr.mxu0 0.0
    %306 = vmatpush2.msra.mxu0 0.0
    %307 = vmatprep.subr.mxu0 0.0
    %308 = vmatpush2.msra.mxu0 0.0
    %309 = vmatprep.subr.mxu0 0.0
    %310 = vmatpush2.msra.mxu0 0.0
    %311 = vmatprep.subr.mxu0 0.0
    %312 = vmatpush2.msra.mxu0 0.0
    %313 = vmatprep.subr.mxu0 0.0
    %314 = vmatpush2.msra.mxu0 0.0
    %315 = vmatprep.subr.mxu0 0.0
    %316 = vmatpush2.msra.mxu0 0.0
    %317 = vmatprep.mubr.f32.mxu0 0.0
    %318 = vmatmul.mubr.f32.gmra.mxu0 %v119
    %v319 = vpop.f32.mrf.mxu0
    %v320 = vadd.f32 %v245, %v319
    %v321 = vpop.f32.mrf.mxu0
    %322 = vmatprep.mubr.f32.mxu0 0.0
    %323 = vmatmul.mubr.f32.gmra.mxu0 %v122
    %v324 = vpop.f32.mrf.mxu0
    %v325 = vadd.f32 %v250, %v324
    %v326 = vpop.f32.mrf.mxu0
    %327 = vdwg.mxu0
    %v328 = vmax.f32 %v320, 0.0
    %v329 = vmax.f32 %v325, 0.0
    %v330 = vld [vmem:[#allocation5] sm:$0xff]
    %v331 = vld [vmem:[#allocation5 + $0x8] sm:$0xff]
    %v332 = vld [vmem:[#allocation5 + $0x10] sm:$0xff]
    %v333 = vld [vmem:[#allocation5 + $0x18] sm:$0xff]
    %v334 = vld [vmem:[#allocation5 + $0x20] sm:$0xff]
    %v335 = vld [vmem:[#allocation5 + $0x28] sm:$0xff]
    %v336 = vld [vmem:[#allocation5 + $0x30] sm:$0xff]
    %v337 = vld [vmem:[#allocation5 + $0x38] sm:$0xff]
    %v338 = vld [vmem:[#allocation5 + $0x40] sm:$0xff]
    %v339 = vld [vmem:[#allocation5 + $0x48] sm:$0xff]
    %v340 = vld [vmem:[#allocation5 + $0x50] sm:$0xff]
    %v341 = vld [vmem:[#allocation5 + $0x58] sm:$0xff]
    %v342 = vld [vmem:[#allocation5 + $0x60] sm:$0xff]
    %v343 = vld [vmem:[#allocation5 + $0x68] sm:$0xff]
    %v344 = vld [vmem:[#allocation5 + $0x70] sm:$0xff]
    %v345 = vld [vmem:[#allocation5 + $0x78] sm:$0xff]
    %v346 = vld [vmem:[%s5] sm:$0x1]
    %v348 = vlaneseq
    %v349 = vshrl.u32 %v348, 7
    %v350 = vsub.s32 0, %v349
    %v351 = vrot.slane %v346, %v350
    %353 = vmatprep.subr.mxu0 0.0
    %354 = vmatpush1.msra.mxu0 %v345
    %355 = vmatprep.subr.mxu0 0.0
    %356 = vmatpush1.msra.mxu0 %v344
    %357 = vmatprep.subr.mxu0 0.0
    %358 = vmatpush1.msra.mxu0 %v343
    %359 = vmatprep.subr.mxu0 0.0
    %360 = vmatpush1.msra.mxu0 %v342
    %361 = vmatprep.subr.mxu0 0.0
    %362 = vmatpush1.msra.mxu0 %v341
    %363 = vmatprep.subr.mxu0 0.0
    %364 = vmatpush1.msra.mxu0 %v340
    %365 = vmatprep.subr.mxu0 0.0
    %366 = vmatpush1.msra.mxu0 %v339
    %367 = vmatprep.subr.mxu0 0.0
    %368 = vmatpush1.msra.mxu0 %v338
    %369 = vmatprep.subr.mxu0 0.0
    %370 = vmatpush1.msra.mxu0 %v337
    %371 = vmatprep.subr.mxu0 0.0
    %372 = vmatpush1.msra.mxu0 %v336
    %373 = vmatprep.subr.mxu0 0.0
    %374 = vmatpush1.msra.mxu0 %v335
    %375 = vmatprep.subr.mxu0 0.0
    %376 = vmatpush1.msra.mxu0 %v334
    %377 = vmatprep.subr.mxu0 0.0
    %378 = vmatpush1.msra.mxu0 %v333
    %379 = vmatprep.subr.mxu0 0.0
    %380 = vmatpush1.msra.mxu0 %v332
    %381 = vmatprep.subr.mxu0 0.0
    %382 = vmatpush1.msra.mxu0 %v331
    %383 = vmatprep.subr.mxu0 0.0
    %384 = vmatpush1.msra.mxu0 %v330
    %385 = vmatprep.subr.mxu0 0.0
    %386 = vmatpush2.msra.mxu0 0.0
    %387 = vmatprep.subr.mxu0 0.0
    %388 = vmatpush2.msra.mxu0 0.0
    %389 = vmatprep.subr.mxu0 0.0
    %390 = vmatpush2.msra.mxu0 0.0
    %391 = vmatprep.subr.mxu0 0.0
    %392 = vmatpush2.msra.mxu0 0.0
    %393 = vmatprep.subr.mxu0 0.0
    %394 = vmatpush2.msra.mxu0 0.0
    %395 = vmatprep.subr.mxu0 0.0
    %396 = vmatpush2.msra.mxu0 0.0
    %397 = vmatprep.subr.mxu0 0.0
    %398 = vmatpush2.msra.mxu0 0.0
    %399 = vmatprep.subr.mxu0 0.0
    %400 = vmatpush2.msra.mxu0 0.0
    %401 = vmatprep.subr.mxu0 0.0
    %402 = vmatpush2.msra.mxu0 0.0
    %403 = vmatprep.subr.mxu0 0.0
    %404 = vmatpush2.msra.mxu0 0.0
    %405 = vmatprep.subr.mxu0 0.0
    %406 = vmatpush2.msra.mxu0 0.0
    %407 = vmatprep.subr.mxu0 0.0
    %408 = vmatpush2.msra.mxu0 0.0
    %409 = vmatprep.subr.mxu0 0.0
    %410 = vmatpush2.msra.mxu0 0.0
    %411 = vmatprep.subr.mxu0 0.0
    %412 = vmatpush2.msra.mxu0 0.0
    %413 = vmatprep.subr.mxu0 0.0
    %414 = vmatpush2.msra.mxu0 0.0
    %415 = vmatprep.subr.mxu0 0.0
    %416 = vmatpush2.msra.mxu0 0.0
    %417 = vmatprep.mubr.f32.mxu0 0.0
    %418 = vmatmul.mubr.f32.gmra.mxu0 %v328
    %v419 = vpop.f32.mrf.mxu0
    %v420 = vadd.f32 %v351, %v419
    %v421 = vpop.f32.mrf.mxu0
    %422 = vmatprep.mubr.f32.mxu0 0.0
    %423 = vmatmul.mubr.f32.gmra.mxu0 %v329
    %v424 = vpop.f32.mrf.mxu0
    %v425 = vadd.f32 %v351, %v424
    %v426 = vpop.f32.mrf.mxu0
    %427 = vdwg.mxu0
    %428 = vst [vmem:[#allocation7] sm:$0xff] %v420
    %429 = vst [vmem:[#allocation7 + $0x8] sm:$0xff] %v425
    // Predicated region
    $region34: #{ste_forward.1} parent=1 // pred_check
      _
    $region35: #{ste_forward.1} parent=1 // pred_check_branch
      %431 = sbr.rel (0) target = $region37
    $region36: #{ste_forward.1} parent=1 // pred_region
      %s433 = ssub.s32 256, 256
      %434 = vsyncadd [#allocation4], %s433
      %s435 = sshll.u32 [#allocation7], 4
      %s436 = int_to_ptr.vmem [resolvable:$true] %s435
      %441 = dma.vmem_to_hbm [thread:$0]  %s436, 256, %s6, [#allocation4], 128, 128, 8
    $region37: #{ste_forward.1} parent=1 // pred_fallthru
      _
    // Predicated region
    $region38: #{ste_forward.1} parent=1 // pred_check
      _
    $region39: #{ste_forward.1} parent=1 // pred_check_branch
      %443 = sbr.rel (0) target = $region41
    $region40: #{ste_forward.1} parent=1 // pred_region
      %444 = dma.done [#allocation4], 256
    $region41: #{ste_forward.1} parent=1 // pred_fallthru
      _
    %445 = vsyncpa [#allocation3], 1
    %446 = vsyncpa [#allocation6], 1
    %447 = vsyncpa [#allocation4], 1

</llo_original>
